<compile_context>
chip_gen: v6e
topology: v6e:2x2x1
jax: 0.10.0
libtpu: 0.0.40
codegen_flags: <defaults>
</compile_context>

<pallas_src>
import jax
import jax.numpy as jnp
from jax.experimental import pallas as pl
from jax.experimental.pallas import tpu as pltpu

EPS = 1e-5

F_IN = 40                        # decoder input features
F1, F2, F3 = 128, 384, 256       # lane-padded hidden widths (matmul N dims)
F1_REAL, F2_REAL, F3_REAL = 100, 300, 220
N_RES, D_AA = 11, 20             # Rearrange('b (n d) -> b n d', n=11, d=20)


def _bn_apply(h, gamma, beta, inv_b, *, relu, out_dtype):
    """Train-mode BatchNorm1d folded to one per-feature scale/shift.

    One pass over the batch: mean = sum(h)/B, var = sum(h*h)/B - mean^2
    (clamped >= 0 against cancellation), then
        y = h * scale + shift,  scale = gamma * rsqrt(var + eps),
                                shift = beta - scale * mean.
    Optional ReLU and output downcast are fused into the same VPU pass.
    NOTE: one-pass variance is cancellation-prone if |mean| >> std with
    trained weights; acceptable at the 1e-1 tolerance used here.
    """
    s = jnp.sum(h, axis=0, keepdims=True)
    ss = jnp.sum(h * h, axis=0, keepdims=True)
    mean = s * inv_b
    var = jnp.maximum(ss * inv_b - mean * mean, 0.0)
    scale = gamma * jax.lax.rsqrt(var + EPS)
    shift = beta - scale * mean
    y = h * scale + shift
    if relu:
        y = jnp.maximum(y, 0.0)
    return y.astype(out_dtype)


def decoder_kernel(x_ref, w1_ref, w2_ref, w3_ref, vec_ref, out_ref):
    inv_b = 1.0 / x_ref.shape[0]

    vecs = vec_ref[...]                          # (6, F2) f32 slab
    g1, bt1 = vecs[0:1, :F1], vecs[1:2, :F1]
    g2, bt2 = vecs[2:3, :F2], vecs[3:4, :F2]
    g3, bt3 = vecs[4:5, :F3], vecs[5:6, :F3]

    # In-kernel cast (data already in VMEM; no wrapper-side convert op).
    x = x_ref[...].astype(jnp.bfloat16)          # (B, 40)

    # Layer 1: Linear(40 -> 100[128]) + BN + ReLU  (bias folded away by BN)
    h1 = jnp.dot(x, w1_ref[...], preferred_element_type=jnp.float32)
    h1 = _bn_apply(h1, g1, bt1, inv_b, relu=True, out_dtype=jnp.bfloat16)

    # Layer 2: Linear(100 -> 300[384]) + BN + ReLU
    h2 = jnp.dot(h1, w2_ref[...], preferred_element_type=jnp.float32)
    h2 = _bn_apply(h2, g2, bt2, inv_b, relu=True, out_dtype=jnp.bfloat16)

    # Layer 3: Linear(300 -> 220[256]) + BN (no activation)
    h3 = jnp.dot(h2, w3_ref[...], preferred_element_type=jnp.float32)
    h3 = _bn_apply(h3, g3, bt3, inv_b, relu=False, out_dtype=jnp.float32)

    # Store the real 220 features: first vreg per row is a full unmasked
    # 128-lane vst, only the 92-lane tail is masked.  Avoids a second
    # wrapper-side slice/copy over the output.
    out_ref[...] = h3[:, :F3_REAL]


def _vmem_limit_bytes():
    """Per-generation scoped-VMEM limit: physical minus headroom, <=100 MiB."""
    try:
        phys = pltpu.get_tpu_info().vmem_capacity_bytes
    except Exception:
        phys = 64 * 1024 * 1024                  # v7x-safe fallback
    return int(min(phys - 16 * 1024 * 1024, 100 * 1024 * 1024))


def decoder_cdr3_forward(x, params):
    """x: (B, 40) f32  -> (B, 11, 20) f32
       x: (G, B, 40) f32 -> (G, B, 11, 20) f32  (G independent decode calls,
       each with its own BatchNorm statistics; weights stay VMEM-resident
       across grid steps and the grid axis is megacore-parallel on v7x)."""
    squeeze = x.ndim == 2
    if squeeze:
        x = x[None]
    G, B, _ = x.shape
    w1, w2, w3, vecs = params

    flops = 2 * G * B * (F_IN * F1 + F1 * F2 + F2 * F3)
    bytes_accessed = (
        G * B * F_IN * 4                               # x (f32)
        + (w1.size + w2.size + w3.size) * 2            # weights (bf16), once
        + vecs.size * 4                                # gamma/beta slab (f32)
        + G * B * F3_REAL * 4                          # output (f32)
    )

    out = pl.pallas_call(
        decoder_kernel,
        out_shape=jax.ShapeDtypeStruct((G, B, F3_REAL), jnp.float32),
        grid=(G,),
        in_specs=[
            pl.BlockSpec((None, B, F_IN), lambda g: (g, 0, 0)),   # x (per call)
            pl.BlockSpec((F_IN, F1), lambda g: (0, 0)),           # w1 resident
            pl.BlockSpec((F1, F2), lambda g: (0, 0)),             # w2 resident
            pl.BlockSpec((F2, F3), lambda g: (0, 0)),             # w3 resident
            pl.BlockSpec((6, F2), lambda g: (0, 0)),              # gamma/beta
        ],
        out_specs=pl.BlockSpec((None, B, F3_REAL), lambda g: (g, 0, 0)),
        compiler_params=pltpu.CompilerParams(
            dimension_semantics=("parallel",),          # 2x on v7x (2 TCs)
            vmem_limit_bytes=_vmem_limit_bytes(),
        ),
        cost_estimate=pl.CostEstimate(
            flops=flops,
            transcendentals=G * (F1 + F2 + F3),
            bytes_accessed=bytes_accessed),
    )(x, w1, w2, w3, vecs)

    # (G, B, 220) -> (G, B, 11, 20): contiguous reshape, no data movement.
    out = out.reshape(G, B, N_RES, D_AA)
    return out[0] if squeeze else out


def init_params(key):
    """PyTorch-style init, padded/packed for the TPU kernel.

    Returns (w1, w2, w3, vec_slab):
      wX       : zero-padded (Fin_pad, Fout_pad) bf16 weights
      vec_slab : (6, 384) f32, rows [g1, b1, g2, b2, g3, b3] (BN gamma/beta),
                 zero-padded past each layer's real width.
    Linear biases are drawn (as torch would) but are mathematically inert
    under training-mode BatchNorm, so they are not packed or passed.
    """
    dims = [(F_IN, F1_REAL, F1), (F1_REAL, F2_REAL, F2), (F2_REAL, F3_REAL, F3)]
    in_pads = [F_IN, F1, F2]
    ws, vec_rows = [], []
    for i, ((fin, fout, fout_pad), fin_pad) in enumerate(zip(dims, in_pads)):
        kw, kb = jax.random.split(jax.random.fold_in(key, i))
        bound = 1.0 / (fin ** 0.5)
        w = jax.random.uniform(kw, (fin, fout), jnp.float32, -bound, bound)
        _ = jax.random.uniform(kb, (fout,), jnp.float32, -bound, bound)  # bias: cancels under train-mode BN
        w_pad = jnp.zeros((fin_pad, fout_pad), jnp.float32).at[:fin, :fout].set(w)
        ws.append(w_pad.astype(jnp.bfloat16))
        gamma = jnp.zeros((F2,), jnp.float32).at[:fout].set(1.0)  # padded lanes: scale=0
        beta = jnp.zeros((F2,), jnp.float32)
        vec_rows.extend([gamma, beta])
    return tuple(ws) + (jnp.stack(vec_rows, axis=0),)


def _reference_forward(x, params):
    """Plain-JAX f32 reference (two-pass BN, no fold) on the same params."""
    w1, w2, w3, vecs = params
    w1, w2, w3 = (w.astype(jnp.float32) for w in (w1, w2, w3))

    def bn(h, g, b):
        m = jnp.mean(h, axis=0, keepdims=True)
        v = jnp.mean((h - m) ** 2, axis=0, keepdims=True)
        return g * (h - m) * jax.lax.rsqrt(v + EPS) + b

    h = jnp.maximum(bn(x @ w1, vecs[0:1, :F1], vecs[1:2, :F1]), 0.0)
    h = jnp.maximum(bn(h @ w2, vecs[2:3, :F2], vecs[3:4, :F2]), 0.0)
    h = bn(h @ w3, vecs[4:5, :F3], vecs[5:6, :F3])
    return h[:, :F3_REAL].reshape(x.shape[0], N_RES, D_AA)


if __name__ == "__main__":
    key = jax.random.PRNGKey(0)
    k_x, k_xs, k_p = jax.random.split(key, 3)

    B = 8  # small batch; BatchNorm needs B > 1
    params = init_params(k_p)

    # --- Single decode call: (B, 40) -> (B, 11, 20) ---
    x = jax.random.normal(k_x, (B, F_IN), dtype=jnp.float32)
    out = jax.block_until_ready(decoder_cdr3_forward(x, params))
    assert out.shape == (B, N_RES, D_AA), out.shape
    assert out.dtype == jnp.float32
    assert bool(jnp.all(jnp.isfinite(out)))
    ref = _reference_forward(x, params)
    max_err = float(jnp.max(jnp.abs(out - ref)))
    assert max_err < 1e-1, max_err

    # --- Stacked decode calls: (G, B, 40) -> (G, B, 11, 20), one grid step
    #     per call, weights resident across steps, per-call BN stats. ---
    G = 3
    xs = jax.random.normal(k_xs, (G, B, F_IN), dtype=jnp.float32)
    outs = jax.block_until_ready(decoder_cdr3_forward(xs, params))
    assert outs.shape == (G, B, N_RES, D_AA), outs.shape
    assert bool(jnp.all(jnp.isfinite(outs)))
    refs = jnp.stack([_reference_forward(xs[g], params) for g in range(G)])
    max_err_g = float(jnp.max(jnp.abs(outs - refs)))
    assert max_err_g < 1e-1, max_err_g

    print("KERNEL_OK")
</pallas_src>

<mosaic_0001>
module attributes {stable_mosaic.version = 11 : i64} {
  func.func @decoder_kernel(%arg0: i32, %arg1: memref<1x8x40xf32, #tpu.memory_space<vmem>>, %arg2: memref<40x128xbf16, #tpu.memory_space<vmem>>, %arg3: memref<128x384xbf16, #tpu.memory_space<vmem>>, %arg4: memref<384x256xbf16, #tpu.memory_space<vmem>>, %arg5: memref<6x384xf32, #tpu.memory_space<vmem>>, %arg6: memref<1x8x220xf32, #tpu.memory_space<vmem>>) attributes {dimension_semantics = [#tpu.dimension_semantics<parallel>], iteration_bounds = array<i64: 1>, scalar_prefetch = 0 : i64, scratch_operands = 0 : i64, tpu.core_type = #tpu.core_type<tc>, window_params = [{transform_indices = @transform_0, window_bounds = array<i64: 1, 8, 40>}, {pipeline_mode = #tpu.pipeline_mode<synchronous>, transform_indices = @transform_1, window_bounds = array<i64: 40, 128>}, {pipeline_mode = #tpu.pipeline_mode<synchronous>, transform_indices = @transform_2, window_bounds = array<i64: 128, 384>}, {pipeline_mode = #tpu.pipeline_mode<synchronous>, transform_indices = @transform_3, window_bounds = array<i64: 384, 256>}, {pipeline_mode = #tpu.pipeline_mode<synchronous>, transform_indices = @transform_4, window_bounds = array<i64: 6, 384>}, {transform_indices = @transform_5, window_bounds = array<i64: 1, 8, 220>}]} {
    %c0 = arith.constant 0 : index
    %c0_0 = arith.constant 0 : index
    %0 = vector.load %arg5[%c0, %c0_0] : memref<6x384xf32, #tpu.memory_space<vmem>>, vector<6x384xf32>
    %1 = vector.extract_strided_slice %0 {offsets = [0, 0], sizes = [1, 128], strides = [1, 1]} : vector<6x384xf32> to vector<1x128xf32>
    %2 = vector.extract_strided_slice %0 {offsets = [1, 0], sizes = [1, 128], strides = [1, 1]} : vector<6x384xf32> to vector<1x128xf32>
    %3 = vector.extract_strided_slice %0 {offsets = [2, 0], sizes = [1, 384], strides = [1, 1]} : vector<6x384xf32> to vector<1x384xf32>
    %4 = vector.extract_strided_slice %0 {offsets = [3, 0], sizes = [1, 384], strides = [1, 1]} : vector<6x384xf32> to vector<1x384xf32>
    %5 = vector.extract_strided_slice %0 {offsets = [4, 0], sizes = [1, 256], strides = [1, 1]} : vector<6x384xf32> to vector<1x256xf32>
    %6 = vector.extract_strided_slice %0 {offsets = [5, 0], sizes = [1, 256], strides = [1, 1]} : vector<6x384xf32> to vector<1x256xf32>
    %c0_1 = arith.constant 0 : index
    %c0_2 = arith.constant 0 : index
    %c0_3 = arith.constant 0 : index
    %7 = vector.load %arg1[%c0_1, %c0_2, %c0_3] : memref<1x8x40xf32, #tpu.memory_space<vmem>>, vector<1x8x40xf32>
    %8 = vector.shape_cast %7 : vector<1x8x40xf32> to vector<8x40xf32>
    %9 = arith.truncf %8 : vector<8x40xf32> to vector<8x40xbf16>
    %c0_4 = arith.constant 0 : index
    %c0_5 = arith.constant 0 : index
    %10 = vector.load %arg2[%c0_4, %c0_5] : memref<40x128xbf16, #tpu.memory_space<vmem>>, vector<40x128xbf16>
    %cst = arith.constant dense<0.000000e+00> : vector<8x128xf32>
    %11 = tpu.matmul %9, %10, %cst {dimension_numbers = #tpu.dot_dimension_numbers<[1], [0], [0], [1], [0, 0, 1, 1], [], []>} : vector<8x40xbf16>, vector<40x128xbf16>, vector<8x128xf32> -> vector<8x128xf32>
    %cst_6 = arith.constant dense<0.000000e+00> : vector<128xf32>
    %12 = vector.multi_reduction <add>, %11, %cst_6 [0] : vector<8x128xf32> to vector<128xf32>
    %13 = vector.shape_cast %12 : vector<128xf32> to vector<1x128xf32>
    %14 = arith.mulf %11, %11 : vector<8x128xf32>
    %cst_7 = arith.constant dense<0.000000e+00> : vector<128xf32>
    %15 = vector.multi_reduction <add>, %14, %cst_7 [0] : vector<8x128xf32> to vector<128xf32>
    %16 = vector.shape_cast %15 : vector<128xf32> to vector<1x128xf32>
    %cst_8 = arith.constant 1.250000e-01 : f32
    %17 = vector.broadcast %cst_8 : f32 to vector<1x128xf32>
    %18 = arith.mulf %13, %17 : vector<1x128xf32>
    %cst_9 = arith.constant 1.250000e-01 : f32
    %19 = vector.broadcast %cst_9 : f32 to vector<1x128xf32>
    %20 = arith.mulf %16, %19 : vector<1x128xf32>
    %21 = arith.mulf %18, %18 : vector<1x128xf32>
    %22 = arith.subf %20, %21 : vector<1x128xf32>
    %cst_10 = arith.constant 0.000000e+00 : f32
    %23 = vector.broadcast %cst_10 : f32 to vector<1x128xf32>
    %24 = arith.maximumf %22, %23 : vector<1x128xf32>
    %cst_11 = arith.constant 9.99999974E-6 : f32
    %25 = vector.broadcast %cst_11 : f32 to vector<1x128xf32>
    %26 = arith.addf %24, %25 : vector<1x128xf32>
    %27 = math.rsqrt %26 : vector<1x128xf32>
    %28 = arith.mulf %1, %27 : vector<1x128xf32>
    %29 = arith.mulf %28, %18 : vector<1x128xf32>
    %30 = arith.subf %2, %29 : vector<1x128xf32>
    %31 = vector.broadcast %28 : vector<1x128xf32> to vector<8x128xf32>
    %32 = arith.mulf %11, %31 : vector<8x128xf32>
    %33 = vector.broadcast %30 : vector<1x128xf32> to vector<8x128xf32>
    %34 = arith.addf %32, %33 : vector<8x128xf32>
    %cst_12 = arith.constant 0.000000e+00 : f32
    %35 = vector.broadcast %cst_12 : f32 to vector<8x128xf32>
    %36 = arith.maximumf %34, %35 : vector<8x128xf32>
    %37 = arith.truncf %36 : vector<8x128xf32> to vector<8x128xbf16>
    %c0_13 = arith.constant 0 : index
    %c0_14 = arith.constant 0 : index
    %38 = vector.load %arg3[%c0_13, %c0_14] : memref<128x384xbf16, #tpu.memory_space<vmem>>, vector<128x384xbf16>
    %cst_15 = arith.constant dense<0.000000e+00> : vector<8x384xf32>
    %39 = tpu.matmul %37, %38, %cst_15 {dimension_numbers = #tpu.dot_dimension_numbers<[1], [0], [0], [1], [0, 0, 1, 1], [], []>} : vector<8x128xbf16>, vector<128x384xbf16>, vector<8x384xf32> -> vector<8x384xf32>
    %cst_16 = arith.constant dense<0.000000e+00> : vector<384xf32>
    %40 = vector.multi_reduction <add>, %39, %cst_16 [0] : vector<8x384xf32> to vector<384xf32>
    %41 = vector.shape_cast %40 : vector<384xf32> to vector<1x384xf32>
    %42 = arith.mulf %39, %39 : vector<8x384xf32>
    %cst_17 = arith.constant dense<0.000000e+00> : vector<384xf32>
    %43 = vector.multi_reduction <add>, %42, %cst_17 [0] : vector<8x384xf32> to vector<384xf32>
    %44 = vector.shape_cast %43 : vector<384xf32> to vector<1x384xf32>
    %cst_18 = arith.constant 1.250000e-01 : f32
    %45 = vector.broadcast %cst_18 : f32 to vector<1x384xf32>
    %46 = arith.mulf %41, %45 : vector<1x384xf32>
    %cst_19 = arith.constant 1.250000e-01 : f32
    %47 = vector.broadcast %cst_19 : f32 to vector<1x384xf32>
    %48 = arith.mulf %44, %47 : vector<1x384xf32>
    %49 = arith.mulf %46, %46 : vector<1x384xf32>
    %50 = arith.subf %48, %49 : vector<1x384xf32>
    %cst_20 = arith.constant 0.000000e+00 : f32
    %51 = vector.broadcast %cst_20 : f32 to vector<1x384xf32>
    %52 = arith.maximumf %50, %51 : vector<1x384xf32>
    %cst_21 = arith.constant 9.99999974E-6 : f32
    %53 = vector.broadcast %cst_21 : f32 to vector<1x384xf32>
    %54 = arith.addf %52, %53 : vector<1x384xf32>
    %55 = math.rsqrt %54 : vector<1x384xf32>
    %56 = arith.mulf %3, %55 : vector<1x384xf32>
    %57 = arith.mulf %56, %46 : vector<1x384xf32>
    %58 = arith.subf %4, %57 : vector<1x384xf32>
    %59 = vector.broadcast %56 : vector<1x384xf32> to vector<8x384xf32>
    %60 = arith.mulf %39, %59 : vector<8x384xf32>
    %61 = vector.broadcast %58 : vector<1x384xf32> to vector<8x384xf32>
    %62 = arith.addf %60, %61 : vector<8x384xf32>
    %cst_22 = arith.constant 0.000000e+00 : f32
    %63 = vector.broadcast %cst_22 : f32 to vector<8x384xf32>
    %64 = arith.maximumf %62, %63 : vector<8x384xf32>
    %65 = arith.truncf %64 : vector<8x384xf32> to vector<8x384xbf16>
    %c0_23 = arith.constant 0 : index
    %c0_24 = arith.constant 0 : index
    %66 = vector.load %arg4[%c0_23, %c0_24] : memref<384x256xbf16, #tpu.memory_space<vmem>>, vector<384x256xbf16>
    %cst_25 = arith.constant dense<0.000000e+00> : vector<8x256xf32>
    %67 = tpu.matmul %65, %66, %cst_25 {dimension_numbers = #tpu.dot_dimension_numbers<[1], [0], [0], [1], [0, 0, 1, 1], [], []>} : vector<8x384xbf16>, vector<384x256xbf16>, vector<8x256xf32> -> vector<8x256xf32>
    %cst_26 = arith.constant dense<0.000000e+00> : vector<256xf32>
    %68 = vector.multi_reduction <add>, %67, %cst_26 [0] : vector<8x256xf32> to vector<256xf32>
    %69 = vector.shape_cast %68 : vector<256xf32> to vector<1x256xf32>
    %70 = arith.mulf %67, %67 : vector<8x256xf32>
    %cst_27 = arith.constant dense<0.000000e+00> : vector<256xf32>
    %71 = vector.multi_reduction <add>, %70, %cst_27 [0] : vector<8x256xf32> to vector<256xf32>
    %72 = vector.shape_cast %71 : vector<256xf32> to vector<1x256xf32>
    %cst_28 = arith.constant 1.250000e-01 : f32
    %73 = vector.broadcast %cst_28 : f32 to vector<1x256xf32>
    %74 = arith.mulf %69, %73 : vector<1x256xf32>
    %cst_29 = arith.constant 1.250000e-01 : f32
    %75 = vector.broadcast %cst_29 : f32 to vector<1x256xf32>
    %76 = arith.mulf %72, %75 : vector<1x256xf32>
    %77 = arith.mulf %74, %74 : vector<1x256xf32>
    %78 = arith.subf %76, %77 : vector<1x256xf32>
    %cst_30 = arith.constant 0.000000e+00 : f32
    %79 = vector.broadcast %cst_30 : f32 to vector<1x256xf32>
    %80 = arith.maximumf %78, %79 : vector<1x256xf32>
    %cst_31 = arith.constant 9.99999974E-6 : f32
    %81 = vector.broadcast %cst_31 : f32 to vector<1x256xf32>
    %82 = arith.addf %80, %81 : vector<1x256xf32>
    %83 = math.rsqrt %82 : vector<1x256xf32>
    %84 = arith.mulf %5, %83 : vector<1x256xf32>
    %85 = arith.mulf %84, %74 : vector<1x256xf32>
    %86 = arith.subf %6, %85 : vector<1x256xf32>
    %87 = vector.broadcast %84 : vector<1x256xf32> to vector<8x256xf32>
    %88 = arith.mulf %67, %87 : vector<8x256xf32>
    %89 = vector.broadcast %86 : vector<1x256xf32> to vector<8x256xf32>
    %90 = arith.addf %88, %89 : vector<8x256xf32>
    %91 = vector.extract_strided_slice %90 {offsets = [0, 0], sizes = [8, 220], strides = [1, 1]} : vector<8x256xf32> to vector<8x220xf32>
    %c0_32 = arith.constant 0 : index
    %c0_33 = arith.constant 0 : index
    %c0_34 = arith.constant 0 : index
    %92 = vector.load %arg6[%c0_32, %c0_33, %c0_34] : memref<1x8x220xf32, #tpu.memory_space<vmem>>, vector<1x8x220xf32>
    %93 = vector.shape_cast %92 : vector<1x8x220xf32> to vector<8x220xf32>
    %94 = vector.shape_cast %91 : vector<8x220xf32> to vector<1x8x220xf32>
    tpu.vector_store %arg6[%c0_32, %c0_33, %c0_34], %94 {strides = array<i32>} : memref<1x8x220xf32, #tpu.memory_space<vmem>>, vector<1x8x220xf32>,
    return
  }
  func.func @transform_0(%arg0: i32) -> (i32, i32, i32) {
    %c0_i32 = arith.constant 0 : i32
    %c0_i32_0 = arith.constant 0 : i32
    %c0_i32_1 = arith.constant 0 : i32
    return %arg0, %c0_i32, %c0_i32_0 : i32, i32, i32
  }
  func.func @transform_1(%arg0: i32) -> (i32, i32) {
    %c0_i32 = arith.constant 0 : i32
    %c0_i32_0 = arith.constant 0 : i32
    %c0_i32_1 = arith.constant 0 : i32
    return %c0_i32, %c0_i32_0 : i32, i32
  }
  func.func @transform_2(%arg0: i32) -> (i32, i32) {
    %c0_i32 = arith.constant 0 : i32
    %c0_i32_0 = arith.constant 0 : i32
    %c0_i32_1 = arith.constant 0 : i32
    return %c0_i32, %c0_i32_0 : i32, i32
  }
  func.func @transform_3(%arg0: i32) -> (i32, i32) {
    %c0_i32 = arith.constant 0 : i32
    %c0_i32_0 = arith.constant 0 : i32
    %c0_i32_1 = arith.constant 0 : i32
    return %c0_i32, %c0_i32_0 : i32, i32
  }
  func.func @transform_4(%arg0: i32) -> (i32, i32) {
    %c0_i32 = arith.constant 0 : i32
    %c0_i32_0 = arith.constant 0 : i32
    %c0_i32_1 = arith.constant 0 : i32
    return %c0_i32, %c0_i32_0 : i32, i32
  }
  func.func @transform_5(%arg0: i32) -> (i32, i32, i32) {
    %c0_i32 = arith.constant 0 : i32
    %c0_i32_0 = arith.constant 0 : i32
    %c0_i32_1 = arith.constant 0 : i32
    return %arg0, %c0_i32, %c0_i32_0 : i32, i32, i32
  }
}

</mosaic_0001>

<llo_original>
// kernel: tpu_custom_call.1
$region0: #{tpu_custom_call.1}
  #allocation0 [shape = 'u32[]', space=smem, size = 0x4, offset = 0x4, fixed_abs, tag = 'smem constant byte address 0x4 - core index']
  #allocation1 [shape = 'u32[144,128]{1,0:T(1,128)}', space=vmem, size = 0x12000, scoped, tag = 'internal scratch']
  %s0 = inlined_call_operand.hbm [shape: f32[1,8,40], index: 0, kind: input, shape index: {}]
  %s1 = inlined_call_operand.hbm [shape: bf16[40,128], index: 1, kind: input, shape index: {}]
  %s2 = inlined_call_operand.hbm [shape: bf16[128,384], index: 2, kind: input, shape index: {}]
  %s3 = inlined_call_operand.hbm [shape: bf16[384,256], index: 3, kind: input, shape index: {}]
  %s4 = inlined_call_operand.hbm [shape: f32[6,384], index: 4, kind: input, shape index: {}]
  %s5 = inlined_call_operand.hbm [shape: f32[1,8,220], index: 5, kind: output, shape index: {}]
  %s6 = sld [smem:[#allocation0]]
  $region50: #{tpu_custom_call.1} parent=0
    _
  %s8 = ssub.s32 1, %s6
  %s9 = scalar_select 0, %s8, %s6
  $region1: #{tpu_custom_call.1} parent=0
    #allocation2 [shape = 'u8[4096]{0}', space=vmem, size = 0x1000, scoped, tag = 'input window, operand 0, single buffered']
    #allocation3 [shape = 's32[1]{0}', space=sflag, size = 0x4, scoped, tag = 'scoped memory for tpu_custom_call.1']
    #allocation4 [shape = 's32[1]{0}', space=sflag, size = 0x4, scoped, tag = 'scoped memory for tpu_custom_call.1']
    #allocation5 [shape = 'u8[10240]{0}', space=vmem, size = 0x2800, scoped, tag = 'input window, operand 1, single buffered']
    #allocation6 [shape = 's32[1]{0}', space=sflag, size = 0x4, scoped, tag = 'scoped memory for tpu_custom_call.1']
    #allocation7 [shape = 'u8[98304]{0}', space=vmem, size = 0x18000, scoped, tag = 'input window, operand 2, single buffered']
    #allocation8 [shape = 'u8[196608]{0}', space=vmem, size = 0x30000, scoped, tag = 'input window, operand 3, single buffered']
    #allocation9 [shape = 's32[1]{0}', space=sflag, size = 0x4, scoped, tag = 'scoped memory for tpu_custom_call.1']
    #allocation10 [shape = 'u8[12288]{0}', space=vmem, size = 0x3000, scoped, tag = 'input window, operand 4, single buffered']
    #allocation11 [shape = 'u8[8192]{0}', space=vmem, size = 0x2000, scoped, tag = 'output window, operand 0, single buffered']
    %10 = vsyncpa [#allocation3], 0
    %11 = vsyncpa [#allocation6], 0
    %12 = vsyncpa [#allocation9], 0
    %13 = vsyncpa [#allocation4], 0
    // Predicated region
    $region2: #{tpu_custom_call.1} parent=1 // pred_check
      _
    $region3: #{tpu_custom_call.1} parent=1 // pred_check_branch
      %15 = sbr.rel (0) target = $region5
    $region4: #{tpu_custom_call.1} parent=1 // pred_region
      %s17 = ssub.s32 128, 128
      %18 = vsyncadd [#allocation3], %s17
      %s20 = sshll.u32 [#allocation2], 4
      %s21 = int_to_ptr.vmem [resolvable:$true] %s20
      %23 = dma.hbm_to_vmem [thread:$0]  %s0, 128, %s21, [#allocation3]
    $region5: #{tpu_custom_call.1} parent=1 // pred_fallthru
      _
    // Predicated region
    $region6: #{tpu_custom_call.1} parent=1 // pred_check
      _
    $region7: #{tpu_custom_call.1} parent=1 // pred_check_branch
      %25 = sbr.rel (0) target = $region9
    $region8: #{tpu_custom_call.1} parent=1 // pred_region
      %s27 = ssub.s32 320, 320
      %28 = vsyncadd [#allocation6], %s27
      %s29 = sshll.u32 [#allocation5], 4
      %s30 = int_to_ptr.vmem [resolvable:$true] %s29
      %35 = dma.hbm_to_vmem [thread:$0]  %s1, 320, %s30, [#allocation6], 64, 64, 4
    $region9: #{tpu_custom_call.1} parent=1 // pred_fallthru
      _
    // Predicated region
    $region10: #{tpu_custom_call.1} parent=1 // pred_check
      _
    $region11: #{tpu_custom_call.1} parent=1 // pred_check_branch
      %37 = sbr.rel (0) target = $region13
    $region12: #{tpu_custom_call.1} parent=1 // pred_region
      %s39 = ssub.s32 3072, 3072
      %40 = vsyncadd [#allocation6], %s39
      %s41 = sshll.u32 [#allocation7], 4
      %s42 = int_to_ptr.vmem [resolvable:$true] %s41
      %47 = dma.hbm_to_vmem [thread:$0]  %s2, 3072, %s42, [#allocation6], 192, 192, 12
    $region13: #{tpu_custom_call.1} parent=1 // pred_fallthru
      _
    // Predicated region
    $region14: #{tpu_custom_call.1} parent=1 // pred_check
      _
    $region15: #{tpu_custom_call.1} parent=1 // pred_check_branch
      %49 = sbr.rel (0) target = $region17
    $region16: #{tpu_custom_call.1} parent=1 // pred_region
      %s51 = ssub.s32 6144, 6144
      %52 = vsyncadd [#allocation9], %s51
      %s53 = sshll.u32 [#allocation8], 4
      %s54 = int_to_ptr.vmem [resolvable:$true] %s53
      %59 = dma.hbm_to_vmem [thread:$0]  %s3, 6144, %s54, [#allocation9], 128, 128, 8
    $region17: #{tpu_custom_call.1} parent=1 // pred_fallthru
      _
    // Predicated region
    $region18: #{tpu_custom_call.1} parent=1 // pred_check
      _
    $region19: #{tpu_custom_call.1} parent=1 // pred_check_branch
      %61 = sbr.rel (0) target = $region21
    $region20: #{tpu_custom_call.1} parent=1 // pred_region
      %s63 = ssub.s32 384, 384
      %64 = vsyncadd [#allocation9], %s63
      %s66 = sshll.u32 [#allocation10], 4
      %s67 = int_to_ptr.vmem [resolvable:$true] %s66
      %69 = dma.hbm_to_vmem [thread:$0]  %s4, 384, %s67, [#allocation9]
    $region21: #{tpu_custom_call.1} parent=1 // pred_fallthru
      _
    // Predicated region
    $region22: #{tpu_custom_call.1} parent=1 // pred_check
      _
    $region23: #{tpu_custom_call.1} parent=1 // pred_check_branch
      %71 = sbr.rel (0) target = $region25
    $region24: #{tpu_custom_call.1} parent=1 // pred_region
      %72 = dma.done [#allocation3], 128
    $region25: #{tpu_custom_call.1} parent=1 // pred_fallthru
      _
    // Predicated region
    $region26: #{tpu_custom_call.1} parent=1 // pred_check
      _
    $region27: #{tpu_custom_call.1} parent=1 // pred_check_branch
      %74 = sbr.rel (0) target = $region29
    $region28: #{tpu_custom_call.1} parent=1 // pred_region
      %75 = dma.done [#allocation6], 320
    $region29: #{tpu_custom_call.1} parent=1 // pred_fallthru
      _
    // Predicated region
    $region30: #{tpu_custom_call.1} parent=1 // pred_check
      _
    $region31: #{tpu_custom_call.1} parent=1 // pred_check_branch
      %77 = sbr.rel (0) target = $region33
    $region32: #{tpu_custom_call.1} parent=1 // pred_region
      %78 = dma.done [#allocation6], 3072
    $region33: #{tpu_custom_call.1} parent=1 // pred_fallthru
      _
    // Predicated region
    $region34: #{tpu_custom_call.1} parent=1 // pred_check
      _
    $region35: #{tpu_custom_call.1} parent=1 // pred_check_branch
      %80 = sbr.rel (0) target = $region37
    $region36: #{tpu_custom_call.1} parent=1 // pred_region
      %81 = dma.done [#allocation9], 6144
    $region37: #{tpu_custom_call.1} parent=1 // pred_fallthru
      _
    // Predicated region
    $region38: #{tpu_custom_call.1} parent=1 // pred_check
      _
    $region39: #{tpu_custom_call.1} parent=1 // pred_check_branch
      %83 = sbr.rel (0) target = $region41
    $region40: #{tpu_custom_call.1} parent=1 // pred_region
      %84 = dma.done [#allocation9], 384
    $region41: #{tpu_custom_call.1} parent=1 // pred_fallthru
      _
    %v86 = vld [vmem:[#allocation10] sm:$0x3f]
    %v87 = vld [vmem:[#allocation10 + $0x8] sm:$0x3f]
    %v88 = vld [vmem:[#allocation10 + $0x10] sm:$0x3f]
    %v89 = vld [vmem:[#allocation2] sm:$0xff]
    %v90 = vpack.c.bf16 %v89, %v89
    %v91 = vld [vmem:[#allocation5] sm:$0xf]
    %v92 = vld [vmem:[#allocation5 + $0x4] sm:$0xf]
    %v93 = vld [vmem:[#allocation5 + $0x8] sm:$0xf]
    %v94 = vld [vmem:[#allocation5 + $0xc] sm:$0xf]
    %v95 = vld [vmem:[#allocation5 + $0x10] sm:$0xf]
    %v101 = vunpack.c.l.b16 %v91
    %v102 = vunpack.c.l.b16 %v92
    %v103 = vunpack.c.l.b16 %v93
    %v104 = vunpack.c.l.b16 %v94
    %v105 = vunpack.c.l.b16 %v95
    %v106 = vpack.c.b16 %v102, %v101
    %v107 = vpack.c.b16 %v104, %v103
    %v108 = vpack.c.b16 %v105, %v105
    %vm111 = vcmask 326656
    %v113 = vsel %vm111, %v90, 0
    %vm115 = vcmask 1043456
    %v117 = vsel %vm115, %v108, 0
    %119 = vmatprep.subr.bf16.mxu0 0
    %120 = vmatpush1.bf16.msra.mxu0 0
    %121 = vmatprep.subr.bf16.mxu0 0
    %122 = vmatpush1.bf16.msra.mxu0 0
    %123 = vmatprep.subr.bf16.mxu0 0
    %124 = vmatpush1.bf16.msra.mxu0 0
    %125 = vmatprep.subr.bf16.mxu0 0
    %126 = vmatpush1.bf16.msra.mxu0 0
    %127 = vmatprep.subr.bf16.mxu0 0
    %128 = vmatpush1.bf16.msra.mxu0 0
    %129 = vmatprep.subr.bf16.mxu0 0
    %130 = vmatpush1.bf16.msra.mxu0 %v117
    %131 = vmatprep.subr.bf16.mxu0 0
    %132 = vmatpush1.bf16.msra.mxu0 %v107
    %133 = vmatprep.subr.bf16.mxu0 0
    %134 = vmatpush1.bf16.msra.mxu0 %v106
    %135 = vmatprep.subr.bf16.mxu0 0
    %136 = vmatpush2.bf16.msra.mxu0 0
    %137 = vmatprep.subr.bf16.mxu0 0
    %138 = vmatpush2.bf16.msra.mxu0 0
    %139 = vmatprep.subr.bf16.mxu0 0
    %140 = vmatpush2.bf16.msra.mxu0 0
    %141 = vmatprep.subr.bf16.mxu0 0
    %142 = vmatpush2.bf16.msra.mxu0 0
    %143 = vmatprep.subr.bf16.mxu0 0
    %144 = vmatpush2.bf16.msra.mxu0 0
    %145 = vmatprep.subr.bf16.mxu0 0
    %146 = vmatpush2.bf16.msra.mxu0 0
    %147 = vmatprep.subr.bf16.mxu0 0
    %148 = vmatpush2.bf16.msra.mxu0 0
    %149 = vmatprep.subr.bf16.mxu0 0
    %150 = vmatpush2.bf16.msra.mxu0 0
    %151 = vmatprep.mubr.bf16.mxu0 0
    %152 = vmatmul.mubr.bf16.gmra.mxu0 %v113
    %v153 = vpop.f32.mrf.mxu0
    %v154 = vadd.f32 0.0, %v153
    %v155 = vpop.f32.mrf.mxu0
    %v156 = vpop.f32.mrf.mxu0
    %v157 = vpop.f32.mrf.mxu0
    %158 = vdwg.mxu0
    %v159 = vrot.slane %v154, 4
    %v160 = vadd.f32 %v154, %v159
    %v161 = vrot.slane %v160, 2
    %v162 = vadd.f32 %v160, %v161
    %v163 = vrot.slane %v162, 1
    %v164 = vadd.f32 %v162, %v163
    %v165 = vmul.f32 %v154, %v154
    %v166 = vrot.slane %v165, 4
    %v167 = vadd.f32 %v165, %v166
    %v168 = vrot.slane %v167, 2
    %v169 = vadd.f32 %v167, %v168
    %v170 = vrot.slane %v169, 1
    %v171 = vadd.f32 %v169, %v170
    %v172 = vmul.f32 %v164, 0.125
    %v173 = vmul.f32 %v171, 0.125
    %v174 = vmul.f32 %v172, %v172
    %v175 = vsub.f32 %v173, %v174
    %v176 = vmax.f32 %v175, 0.0
    %v177 = vadd.f32 %v176, 1e-05
    %v178 = vrsqrt.pop %v177
    %v179 = vmul.f32 %v86, %v178
    %v180 = vmul.f32 %v179, %v172
    %v182 = vrot.slane %v180, 7
    %v184 = vsub.f32 %v86, %v182
    %v185 = vlaneseq
    %v186 = vshrl.u32 %v185, 7
    %v187 = vsub.s32 0, %v186
    %v188 = vrot.slane %v179, %v187
    %v189 = vmul.f32 %v154, %v188
    %v190 = vlaneseq
    %v191 = vshrl.u32 %v190, 7
    %v192 = vsub.s32 1, %v191
    %v193 = vrot.slane %v184, %v192
    %v194 = vadd.f32 %v189, %v193
    %v195 = vmax.f32 %v194, 0.0
    %v196 = vpack.c.bf16 %v195, %v195
    %v197 = vld [vmem:[#allocation7] sm:$0xff]
    %v198 = vld [vmem:[#allocation7 + $0x8] sm:$0xf]
    %v199 = vld [vmem:[#allocation7 + $0xc] sm:$0xff]
    %v200 = vld [vmem:[#allocation7 + $0x14] sm:$0xf]
    %v201 = vld [vmem:[#allocation7 + $0x18] sm:$0xff]
    %v202 = vld [vmem:[#allocation7 + $0x20] sm:$0xf]
    %v203 = vld [vmem:[#allocation7 + $0x24] sm:$0xff]
    %v204 = vld [vmem:[#allocation7 + $0x2c] sm:$0xf]
    %v205 = vld [vmem:[#allocation7 + $0x30] sm:$0xff]
    %v206 = vld [vmem:[#allocation7 + $0x38] sm:$0xf]
    %v207 = vld [vmem:[#allocation7 + $0x3c] sm:$0xff]
    %v208 = vld [vmem:[#allocation7 + $0x44] sm:$0xf]
    %v209 = vld [vmem:[#allocation7 + $0x48] sm:$0xff]
    %v210 = vld [vmem:[#allocation7 + $0x50] sm:$0xf]
    %v211 = vld [vmem:[#allocation7 + $0x54] sm:$0xff]
    %v212 = vld [vmem:[#allocation7 + $0x5c] sm:$0xf]
    %v213 = vld [vmem:[#allocation7 + $0x60] sm:$0xff]
    %v214 = vld [vmem:[#allocation7 + $0x68] sm:$0xf]
    %v215 = vld [vmem:[#allocation7 + $0x6c] sm:$0xff]
    %v216 = vld [vmem:[#allocation7 + $0x74] sm:$0xf]
    %v217 = vld [vmem:[#allocation7 + $0x78] sm:$0xff]
    %v218 = vld [vmem:[#allocation7 + $0x80] sm:$0xf]
    %v219 = vld [vmem:[#allocation7 + $0x84] sm:$0xff]
    %v220 = vld [vmem:[#allocation7 + $0x8c] sm:$0xf]
    %v221 = vld [vmem:[#allocation7 + $0x90] sm:$0xff]
    %v222 = vld [vmem:[#allocation7 + $0x98] sm:$0xf]
    %v223 = vld [vmem:[#allocation7 + $0x9c] sm:$0xff]
    %v224 = vld [vmem:[#allocation7 + $0xa4] sm:$0xf]
    %v225 = vld [vmem:[#allocation7 + $0xa8] sm:$0xff]
    %v226 = vld [vmem:[#allocation7 + $0xb0] sm:$0xf]
    %v227 = vld [vmem:[#allocation7 + $0xb4] sm:$0xff]
    %v228 = vld [vmem:[#allocation7 + $0xbc] sm:$0xf]
    %v261 = vunpack.c.l.b16 %v197
    %v262 = vunpack.c.h.b16 %v197
    %v263 = vunpack.c.l.b16 %v198
    %v264 = vunpack.c.l.b16 %v199
    %v265 = vunpack.c.h.b16 %v199
    %v266 = vunpack.c.l.b16 %v200
    %v267 = vunpack.c.l.b16 %v201
    %v268 = vunpack.c.h.b16 %v201
    %v269 = vunpack.c.l.b16 %v202
    %v270 = vunpack.c.l.b16 %v203
    %v271 = vunpack.c.h.b16 %v203
    %v272 = vunpack.c.l.b16 %v204
    %v273 = vunpack.c.l.b16 %v205
    %v274 = vunpack.c.h.b16 %v205
    %v275 = vunpack.c.l.b16 %v206
    %v276 = vunpack.c.l.b16 %v207
    %v277 = vunpack.c.h.b16 %v207
    %v278 = vunpack.c.l.b16 %v208
    %v279 = vunpack.c.l.b16 %v209
    %v280 = vunpack.c.h.b16 %v209
    %v281 = vunpack.c.l.b16 %v210
    %v282 = vunpack.c.l.b16 %v211
    %v283 = vunpack.c.h.b16 %v211
    %v284 = vunpack.c.l.b16 %v212
    %v285 = vunpack.c.l.b16 %v213
    %v286 = vunpack.c.h.b16 %v213
    %v287 = vunpack.c.l.b16 %v214
    %v288 = vunpack.c.l.b16 %v215
    %v289 = vunpack.c.h.b16 %v215
    %v290 = vunpack.c.l.b16 %v216
    %v291 = vunpack.c.l.b16 %v217
    %v292 = vunpack.c.h.b16 %v217
    %v293 = vunpack.c.l.b16 %v218
    %v294 = vunpack.c.l.b16 %v219
    %v295 = vunpack.c.h.b16 %v219
    %v296 = vunpack.c.l.b16 %v220
    %v297 = vunpack.c.l.b16 %v221
    %v298 = vunpack.c.h.b16 %v221
    %v299 = vunpack.c.l.b16 %v222
    %v300 = vunpack.c.l.b16 %v223
    %v301 = vunpack.c.h.b16 %v223
    %v302 = vunpack.c.l.b16 %v224
    %v303 = vunpack.c.l.b16 %v225
    %v304 = vunpack.c.h.b16 %v225
    %v305 = vunpack.c.l.b16 %v226
    %v306 = vunpack.c.l.b16 %v227
    %v307 = vunpack.c.h.b16 %v227
    %v308 = vunpack.c.l.b16 %v228
    %v309 = vpack.c.b16 %v264, %v261
    %v310 = vpack.c.b16 %v265, %v262
    %v311 = vpack.c.b16 %v266, %v263
    %v312 = vpack.c.b16 %v270, %v267
    %v313 = vpack.c.b16 %v271, %v268
    %v314 = vpack.c.b16 %v272, %v269
    %v315 = vpack.c.b16 %v276, %v273
    %v316 = vpack.c.b16 %v277, %v274
    %v317 = vpack.c.b16 %v278, %v275
    %v318 = vpack.c.b16 %v282, %v279
    %v319 = vpack.c.b16 %v283, %v280
    %v320 = vpack.c.b16 %v284, %v281
    %v321 = vpack.c.b16 %v288, %v285
    %v322 = vpack.c.b16 %v289, %v286
    %v323 = vpack.c.b16 %v290, %v287
    %v324 = vpack.c.b16 %v294, %v291
    %v325 = vpack.c.b16 %v295, %v292
    %v326 = vpack.c.b16 %v296, %v293
    %v327 = vpack.c.b16 %v300, %v297
    %v328 = vpack.c.b16 %v301, %v298
    %v329 = vpack.c.b16 %v302, %v299
    %v330 = vpack.c.b16 %v306, %v303
    %v331 = vpack.c.b16 %v307, %v304
    %v332 = vpack.c.b16 %v308, %v305
    %357 = vmatprep.subr.bf16.mxu0 %v331
    %358 = vmatpush1.bf16.msra.mxu0 %v330
    %359 = vmatprep.subr.bf16.mxu0 %v328
    %360 = vmatpush1.bf16.msra.mxu0 %v327
    %361 = vmatprep.subr.bf16.mxu0 %v325
    %362 = vmatpush1.bf16.msra.mxu0 %v324
    %363 = vmatprep.subr.bf16.mxu0 %v322
    %364 = vmatpush1.bf16.msra.mxu0 %v321
    %365 = vmatprep.subr.bf16.mxu0 %v319
    %366 = vmatpush1.bf16.msra.mxu0 %v318
    %367 = vmatprep.subr.bf16.mxu0 %v316
    %368 = vmatpush1.bf16.msra.mxu0 %v315
    %369 = vmatprep.subr.bf16.mxu0 %v313
    %370 = vmatpush1.bf16.msra.mxu0 %v312
    %371 = vmatprep.subr.bf16.mxu0 %v310
    %372 = vmatpush1.bf16.msra.mxu0 %v309
    %373 = vmatprep.subr.bf16.mxu0 0
    %374 = vmatpush2.bf16.msra.mxu0 0
    %375 = vmatprep.subr.bf16.mxu0 0
    %376 = vmatpush2.bf16.msra.mxu0 0
    %377 = vmatprep.subr.bf16.mxu0 0
    %378 = vmatpush2.bf16.msra.mxu0 0
    %379 = vmatprep.subr.bf16.mxu0 0
    %380 = vmatpush2.bf16.msra.mxu0 0
    %381 = vmatprep.subr.bf16.mxu0 0
    %382 = vmatpush2.bf16.msra.mxu0 0
    %383 = vmatprep.subr.bf16.mxu0 0
    %384 = vmatpush2.bf16.msra.mxu0 0
    %385 = vmatprep.subr.bf16.mxu0 0
    %386 = vmatpush2.bf16.msra.mxu0 0
    %387 = vmatprep.subr.bf16.mxu0 0
    %388 = vmatpush2.bf16.msra.mxu0 0
    %389 = vmatprep.mubr.bf16.mxu0 0
    %390 = vmatmul.mubr.bf16.gmra.mxu0 %v196
    %v391 = vpop.f32.mrf.mxu0
    %v392 = vadd.f32 0.0, %v391
    %v393 = vpop.f32.mrf.mxu0
    %v394 = vadd.f32 0.0, %v393
    %v395 = vpop.f32.mrf.mxu0
    %v396 = vpop.f32.mrf.mxu0
    %397 = vdwg.mxu0
    %398 = vmatprep.subr.bf16.mxu0 0
    %399 = vmatpush1.bf16.msra.mxu0 %v332
    %400 = vmatprep.subr.bf16.mxu0 0
    %401 = vmatpush1.bf16.msra.mxu0 %v329
    %402 = vmatprep.subr.bf16.mxu0 0
    %403 = vmatpush1.bf16.msra.mxu0 %v326
    %404 = vmatprep.subr.bf16.mxu0 0
    %405 = vmatpush1.bf16.msra.mxu0 %v323
    %406 = vmatprep.subr.bf16.mxu0 0
    %407 = vmatpush1.bf16.msra.mxu0 %v320
    %408 = vmatprep.subr.bf16.mxu0 0
    %409 = vmatpush1.bf16.msra.mxu0 %v317
    %410 = vmatprep.subr.bf16.mxu0 0
    %411 = vmatpush1.bf16.msra.mxu0 %v314
    %412 = vmatprep.subr.bf16.mxu0 0
    %413 = vmatpush1.bf16.msra.mxu0 %v311
    %414 = vmatprep.subr.bf16.mxu0 0
    %415 = vmatpush2.bf16.msra.mxu0 0
    %416 = vmatprep.subr.bf16.mxu0 0
    %417 = vmatpush2.bf16.msra.mxu0 0
    %418 = vmatprep.subr.bf16.mxu0 0
    %419 = vmatpush2.bf16.msra.mxu0 0
    %420 = vmatprep.subr.bf16.mxu0 0
    %421 = vmatpush2.bf16.msra.mxu0 0
    %422 = vmatprep.subr.bf16.mxu0 0
    %423 = vmatpush2.bf16.msra.mxu0 0
    %424 = vmatprep.subr.bf16.mxu0 0
    %425 = vmatpush2.bf16.msra.mxu0 0
    %426 = vmatprep.subr.bf16.mxu0 0
    %427 = vmatpush2.bf16.msra.mxu0 0
    %428 = vmatprep.subr.bf16.mxu0 0
    %429 = vmatpush2.bf16.msra.mxu0 0
    %430 = vmatprep.mubr.bf16.mxu0 0
    %431 = vmatmul.mubr.bf16.gmra.mxu0 %v196
    %v432 = vpop.f32.mrf.mxu0
    %v433 = vadd.f32 0.0, %v432
    %v434 = vpop.f32.mrf.mxu0
    %v435 = vpop.f32.mrf.mxu0
    %v436 = vpop.f32.mrf.mxu0
    %437 = vdwg.mxu0
    %v438 = vrot.slane %v392, 4
    %v439 = vadd.f32 %v392, %v438
    %v440 = vrot.slane %v439, 2
    %v441 = vadd.f32 %v439, %v440
    %v442 = vrot.slane %v441, 1
    %v443 = vadd.f32 %v441, %v442
    %v444 = vrot.slane %v394, 4
    %v445 = vadd.f32 %v394, %v444
    %v446 = vrot.slane %v445, 2
    %v447 = vadd.f32 %v445, %v446
    %v448 = vrot.slane %v447, 1
    %v449 = vadd.f32 %v447, %v448
    %v450 = vrot.slane %v433, 4
    %v451 = vadd.f32 %v433, %v450
    %v452 = vrot.slane %v451, 2
    %v453 = vadd.f32 %v451, %v452
    %v454 = vrot.slane %v453, 1
    %v455 = vadd.f32 %v453, %v454
    %v456 = vmul.f32 %v392, %v392
    %v457 = vmul.f32 %v394, %v394
    %v458 = vmul.f32 %v433, %v433
    %v459 = vrot.slane %v456, 4
    %v460 = vadd.f32 %v456, %v459
    %v461 = vrot.slane %v460, 2
    %v462 = vadd.f32 %v460, %v461
    %v463 = vrot.slane %v462, 1
    %v464 = vadd.f32 %v462, %v463
    %v465 = vrot.slane %v457, 4
    %v466 = vadd.f32 %v457, %v465
    %v467 = vrot.slane %v466, 2
    %v468 = vadd.f32 %v466, %v467
    %v469 = vrot.slane %v468, 1
    %v470 = vadd.f32 %v468, %v469
    %v471 = vrot.slane %v458, 4
    %v472 = vadd.f32 %v458, %v471
    %v473 = vrot.slane %v472, 2
    %v474 = vadd.f32 %v472, %v473
    %v475 = vrot.slane %v474, 1
    %v476 = vadd.f32 %v474, %v475
    %v477 = vmul.f32 %v443, 0.125
    %v478 = vmul.f32 %v449, 0.125
    %v479 = vmul.f32 %v455, 0.125
    %v480 = vmul.f32 %v464, 0.125
    %v481 = vmul.f32 %v470, 0.125
    %v482 = vmul.f32 %v476, 0.125
    %v483 = vmul.f32 %v477, %v477
    %v484 = vmul.f32 %v478, %v478
    %v485 = vmul.f32 %v479, %v479
    %v486 = vsub.f32 %v480, %v483
    %v487 = vsub.f32 %v481, %v484
    %v488 = vsub.f32 %v482, %v485
    %v489 = vmax.f32 %v486, 0.0
    %v490 = vmax.f32 %v487, 0.0
    %v491 = vmax.f32 %v488, 0.0
    %v492 = vadd.f32 %v489, 1e-05
    %v493 = vadd.f32 %v490, 1e-05
    %v494 = vadd.f32 %v491, 1e-05
    %v495 = vrsqrt.pop %v492
    %v496 = vrsqrt.pop %v493
    %v497 = vrsqrt.pop %v494
    %v498 = vmul.f32 %v86, %v495
    %v499 = vmul.f32 %v87, %v496
    %v500 = vmul.f32 %v88, %v497
    %v501 = vmul.f32 %v498, %v477
    %v502 = vmul.f32 %v499, %v478
    %v503 = vmul.f32 %v500, %v479
    %v507 = vrot.slane %v501, 7
    %v508 = vrot.slane %v502, 7
    %v509 = vrot.slane %v503, 7
    %v513 = vsub.f32 %v86, %v507
    %v514 = vsub.f32 %v87, %v508
    %v515 = vsub.f32 %v88, %v509
    %v516 = vlaneseq
    %v517 = vshrl.u32 %v516, 7
    %v518 = vsub.s32 2, %v517
    %v519 = vrot.slane %v498, %v518
    %v520 = vlaneseq
    %v521 = vshrl.u32 %v520, 7
    %v522 = vsub.s32 2, %v521
    %v523 = vrot.slane %v499, %v522
    %v524 = vlaneseq
    %v525 = vshrl.u32 %v524, 7
    %v526 = vsub.s32 2, %v525
    %v527 = vrot.slane %v500, %v526
    %v528 = vmul.f32 %v392, %v519
    %v529 = vmul.f32 %v394, %v523
    %v530 = vmul.f32 %v433, %v527
    %v531 = vlaneseq
    %v532 = vshrl.u32 %v531, 7
    %v533 = vsub.s32 3, %v532
    %v534 = vrot.slane %v513, %v533
    %v535 = vlaneseq
    %v536 = vshrl.u32 %v535, 7
    %v537 = vsub.s32 3, %v536
    %v538 = vrot.slane %v514, %v537
    %v539 = vlaneseq
    %v540 = vshrl.u32 %v539, 7
    %v541 = vsub.s32 3, %v540
    %v542 = vrot.slane %v515, %v541
    %v543 = vadd.f32 %v528, %v534
    %v544 = vadd.f32 %v529, %v538
    %v545 = vadd.f32 %v530, %v542
    %v546 = vmax.f32 %v543, 0.0
    %v547 = vmax.f32 %v544, 0.0
    %v548 = vmax.f32 %v545, 0.0
    %v549 = vpack.c.bf16 %v546, %v546
    %v550 = vpack.c.bf16 %v547, %v547
    %v551 = vpack.c.bf16 %v548, %v548
    %v552 = vld [vmem:[#allocation8] sm:$0xff]
    %v553 = vld [vmem:[#allocation8 + $0x8] sm:$0xff]
    %v554 = vld [vmem:[#allocation8 + $0x10] sm:$0xff]
    %v555 = vld [vmem:[#allocation8 + $0x18] sm:$0xff]
    %v556 = vld [vmem:[#allocation8 + $0x20] sm:$0xff]
    %v557 = vld [vmem:[#allocation8 + $0x28] sm:$0xff]
    %v558 = vld [vmem:[#allocation8 + $0x30] sm:$0xff]
    %v559 = vld [vmem:[#allocation8 + $0x38] sm:$0xff]
    %v560 = vld [vmem:[#allocation8 + $0x40] sm:$0xff]
    %v561 = vld [vmem:[#allocation8 + $0x48] sm:$0xff]
    %v562 = vld [vmem:[#allocation8 + $0x50] sm:$0xff]
    %v563 = vld [vmem:[#allocation8 + $0x58] sm:$0xff]
    %v564 = vld [vmem:[#allocation8 + $0x60] sm:$0xff]
    %v565 = vld [vmem:[#allocation8 + $0x68] sm:$0xff]
    %v566 = vld [vmem:[#allocation8 + $0x70] sm:$0xff]
    %v567 = vld [vmem:[#allocation8 + $0x78] sm:$0xff]
    %v568 = vld [vmem:[#allocation8 + $0x80] sm:$0xff]
    %v569 = vld [vmem:[#allocation8 + $0x88] sm:$0xff]
    %v570 = vld [vmem:[#allocation8 + $0x90] sm:$0xff]
    %v571 = vld [vmem:[#allocation8 + $0x98] sm:$0xff]
    %v572 = vld [vmem:[#allocation8 + $0xa0] sm:$0xff]
    %v573 = vld [vmem:[#allocation8 + $0xa8] sm:$0xff]
    %v574 = vld [vmem:[#allocation8 + $0xb0] sm:$0xff]
    %v575 = vld [vmem:[#allocation8 + $0xb8] sm:$0xff]
    %v576 = vld [vmem:[#allocation8 + $0xc0] sm:$0xff]
    %v577 = vld [vmem:[#allocation8 + $0xc8] sm:$0xff]
    %v578 = vld [vmem:[#allocation8 + $0xd0] sm:$0xff]
    %v579 = vld [vmem:[#allocation8 + $0xd8] sm:$0xff]
    %v580 = vld [vmem:[#allocation8 + $0xe0] sm:$0xff]
    %v581 = vld [vmem:[#allocation8 + $0xe8] sm:$0xff]
    %v582 = vld [vmem:[#allocation8 + $0xf0] sm:$0xff]
    %v583 = vld [vmem:[#allocation8 + $0xf8] sm:$0xff]
    %v584 = vld [vmem:[#allocation8 + $0x100] sm:$0xff]
    %v585 = vld [vmem:[#allocation8 + $0x108] sm:$0xff]
    %v586 = vld [vmem:[#allocation8 + $0x110] sm:$0xff]
    %v587 = vld [vmem:[#allocation8 + $0x118] sm:$0xff]
    %v588 = vld [vmem:[#allocation8 + $0x120] sm:$0xff]
    %v589 = vld [vmem:[#allocation8 + $0x128] sm:$0xff]
    %v590 = vld [vmem:[#allocation8 + $0x130] sm:$0xff]
    %v591 = vld [vmem:[#allocation8 + $0x138] sm:$0xff]
    %v592 = vld [vmem:[#allocation8 + $0x140] sm:$0xff]
    %v593 = vld [vmem:[#allocation8 + $0x148] sm:$0xff]
    %v594 = vld [vmem:[#allocation8 + $0x150] sm:$0xff]
    %v595 = vld [vmem:[#allocation8 + $0x158] sm:$0xff]
    %v596 = vld [vmem:[#allocation8 + $0x160] sm:$0xff]
    %v597 = vld [vmem:[#allocation8 + $0x168] sm:$0xff]
    %v598 = vld [vmem:[#allocation8 + $0x170] sm:$0xff]
    %v599 = vld [vmem:[#allocation8 + $0x178] sm:$0xff]
    %v648 = vunpack.c.l.b16 %v552
    %v649 = vunpack.c.h.b16 %v552
    %v650 = vunpack.c.l.b16 %v553
    %v651 = vunpack.c.h.b16 %v553
    %v652 = vunpack.c.l.b16 %v554
    %v653 = vunpack.c.h.b16 %v554
    %v654 = vunpack.c.l.b16 %v555
    %v655 = vunpack.c.h.b16 %v555
    %v656 = vunpack.c.l.b16 %v556
    %v657 = vunpack.c.h.b16 %v556
    %v658 = vunpack.c.l.b16 %v557
    %v659 = vunpack.c.h.b16 %v557
    %v660 = vunpack.c.l.b16 %v558
    %v661 = vunpack.c.h.b16 %v558
    %v662 = vunpack.c.l.b16 %v559
    %v663 = vunpack.c.h.b16 %v559
    %v664 = vunpack.c.l.b16 %v560
    %v665 = vunpack.c.h.b16 %v560
    %v666 = vunpack.c.l.b16 %v561
    %v667 = vunpack.c.h.b16 %v561
    %v668 = vunpack.c.l.b16 %v562
    %v669 = vunpack.c.h.b16 %v562
    %v670 = vunpack.c.l.b16 %v563
    %v671 = vunpack.c.h.b16 %v563
    %v672 = vunpack.c.l.b16 %v564
    %v673 = vunpack.c.h.b16 %v564
    %v674 = vunpack.c.l.b16 %v565
    %v675 = vunpack.c.h.b16 %v565
    %v676 = vunpack.c.l.b16 %v566
    %v677 = vunpack.c.h.b16 %v566
    %v678 = vunpack.c.l.b16 %v567
    %v679 = vunpack.c.h.b16 %v567
    %v680 = vunpack.c.l.b16 %v568
    %v681 = vunpack.c.h.b16 %v568
    %v682 = vunpack.c.l.b16 %v569
    %v683 = vunpack.c.h.b16 %v569
    %v684 = vunpack.c.l.b16 %v570
    %v685 = vunpack.c.h.b16 %v570
    %v686 = vunpack.c.l.b16 %v571
    %v687 = vunpack.c.h.b16 %v571
    %v688 = vunpack.c.l.b16 %v572
    %v689 = vunpack.c.h.b16 %v572
    %v690 = vunpack.c.l.b16 %v573
    %v691 = vunpack.c.h.b16 %v573
    %v692 = vunpack.c.l.b16 %v574
    %v693 = vunpack.c.h.b16 %v574
    %v694 = vunpack.c.l.b16 %v575
    %v695 = vunpack.c.h.b16 %v575
    %v696 = vunpack.c.l.b16 %v576
    %v697 = vunpack.c.h.b16 %v576
    %v698 = vunpack.c.l.b16 %v577
    %v699 = vunpack.c.h.b16 %v577
    %v700 = vunpack.c.l.b16 %v578
    %v701 = vunpack.c.h.b16 %v578
    %v702 = vunpack.c.l.b16 %v579
    %v703 = vunpack.c.h.b16 %v579
    %v704 = vunpack.c.l.b16 %v580
    %v705 = vunpack.c.h.b16 %v580
    %v706 = vunpack.c.l.b16 %v581
    %v707 = vunpack.c.h.b16 %v581
    %v708 = vunpack.c.l.b16 %v582
    %v709 = vunpack.c.h.b16 %v582
    %v710 = vunpack.c.l.b16 %v583
    %v711 = vunpack.c.h.b16 %v583
    %v712 = vunpack.c.l.b16 %v584
    %v713 = vunpack.c.h.b16 %v584
    %v714 = vunpack.c.l.b16 %v585
    %v715 = vunpack.c.h.b16 %v585
    %v716 = vunpack.c.l.b16 %v586
    %v717 = vunpack.c.h.b16 %v586
    %v718 = vunpack.c.l.b16 %v587
    %v719 = vunpack.c.h.b16 %v587
    %v720 = vunpack.c.l.b16 %v588
    %v721 = vunpack.c.h.b16 %v588
    %v722 = vunpack.c.l.b16 %v589
    %v723 = vunpack.c.h.b16 %v589
    %v724 = vunpack.c.l.b16 %v590
    %v725 = vunpack.c.h.b16 %v590
    %v726 = vunpack.c.l.b16 %v591
    %v727 = vunpack.c.h.b16 %v591
    %v728 = vunpack.c.l.b16 %v592
    %v729 = vunpack.c.h.b16 %v592
    %v730 = vunpack.c.l.b16 %v593
    %v731 = vunpack.c.h.b16 %v593
    %v732 = vunpack.c.l.b16 %v594
    %v733 = vunpack.c.h.b16 %v594
    %v734 = vunpack.c.l.b16 %v595
    %v735 = vunpack.c.h.b16 %v595
    %v736 = vunpack.c.l.b16 %v596
    %v737 = vunpack.c.h.b16 %v596
    %v738 = vunpack.c.l.b16 %v597
    %v739 = vunpack.c.h.b16 %v597
    %v740 = vunpack.c.l.b16 %v598
    %v741 = vunpack.c.h.b16 %v598
    %v742 = vunpack.c.l.b16 %v599
    %v743 = vunpack.c.h.b16 %v599
    %v744 = vpack.c.b16 %v650, %v648
    %v745 = vpack.c.b16 %v651, %v649
    %v746 = vpack.c.b16 %v654, %v652
    %v747 = vpack.c.b16 %v655, %v653
    %v748 = vpack.c.b16 %v658, %v656
    %v749 = vpack.c.b16 %v659, %v657
    %v750 = vpack.c.b16 %v662, %v660
    %v751 = vpack.c.b16 %v663, %v661
    %v752 = vpack.c.b16 %v666, %v664
    %v753 = vpack.c.b16 %v667, %v665
    %v754 = vpack.c.b16 %v670, %v668
    %v755 = vpack.c.b16 %v671, %v669
    %v756 = vpack.c.b16 %v674, %v672
    %v757 = vpack.c.b16 %v675, %v673
    %v758 = vpack.c.b16 %v678, %v676
    %v759 = vpack.c.b16 %v679, %v677
    %v760 = vpack.c.b16 %v682, %v680
    %v761 = vpack.c.b16 %v683, %v681
    %v762 = vpack.c.b16 %v686, %v684
    %v763 = vpack.c.b16 %v687, %v685
    %v764 = vpack.c.b16 %v690, %v688
    %v765 = vpack.c.b16 %v691, %v689
    %v766 = vpack.c.b16 %v694, %v692
    %v767 = vpack.c.b16 %v695, %v693
    %v768 = vpack.c.b16 %v698, %v696
    %v769 = vpack.c.b16 %v699, %v697
    %v770 = vpack.c.b16 %v702, %v700
    %v771 = vpack.c.b16 %v703, %v701
    %v772 = vpack.c.b16 %v706, %v704
    %v773 = vpack.c.b16 %v707, %v705
    %v774 = vpack.c.b16 %v710, %v708
    %v775 = vpack.c.b16 %v711, %v709
    %v776 = vpack.c.b16 %v714, %v712
    %v777 = vpack.c.b16 %v715, %v713
    %v778 = vpack.c.b16 %v718, %v716
    %v779 = vpack.c.b16 %v719, %v717
    %v780 = vpack.c.b16 %v722, %v720
    %v781 = vpack.c.b16 %v723, %v721
    %v782 = vpack.c.b16 %v726, %v724
    %v783 = vpack.c.b16 %v727, %v725
    %v784 = vpack.c.b16 %v730, %v728
    %v785 = vpack.c.b16 %v731, %v729
    %v786 = vpack.c.b16 %v734, %v732
    %v787 = vpack.c.b16 %v735, %v733
    %v788 = vpack.c.b16 %v738, %v736
    %v789 = vpack.c.b16 %v739, %v737
    %v790 = vpack.c.b16 %v742, %v740
    %v791 = vpack.c.b16 %v743, %v741
    %840 = vmatprep.subr.bf16.mxu0 %v759
    %841 = vmatpush1.bf16.msra.mxu0 %v758
    %842 = vmatprep.subr.bf16.mxu0 %v757
    %843 = vmatpush1.bf16.msra.mxu0 %v756
    %844 = vmatprep.subr.bf16.mxu0 %v755
    %845 = vmatpush1.bf16.msra.mxu0 %v754
    %846 = vmatprep.subr.bf16.mxu0 %v753
    %847 = vmatpush1.bf16.msra.mxu0 %v752
    %848 = vmatprep.subr.bf16.mxu0 %v751
    %849 = vmatpush1.bf16.msra.mxu0 %v750
    %850 = vmatprep.subr.bf16.mxu0 %v749
    %851 = vmatpush1.bf16.msra.mxu0 %v748
    %852 = vmatprep.subr.bf16.mxu0 %v747
    %853 = vmatpush1.bf16.msra.mxu0 %v746
    %854 = vmatprep.subr.bf16.mxu0 %v745
    %855 = vmatpush1.bf16.msra.mxu0 %v744
    %856 = vmatprep.subr.bf16.mxu0 %v775
    %857 = vmatpush2.bf16.msra.mxu0 %v774
    %858 = vmatprep.subr.bf16.mxu0 %v773
    %859 = vmatpush2.bf16.msra.mxu0 %v772
    %860 = vmatprep.subr.bf16.mxu0 %v771
    %861 = vmatpush2.bf16.msra.mxu0 %v770
    %862 = vmatprep.subr.bf16.mxu0 %v769
    %863 = vmatpush2.bf16.msra.mxu0 %v768
    %864 = vmatprep.subr.bf16.mxu0 %v767
    %865 = vmatpush2.bf16.msra.mxu0 %v766
    %866 = vmatprep.subr.bf16.mxu0 %v765
    %867 = vmatpush2.bf16.msra.mxu0 %v764
    %868 = vmatprep.subr.bf16.mxu0 %v763
    %869 = vmatpush2.bf16.msra.mxu0 %v762
    %870 = vmatprep.subr.bf16.mxu0 %v761
    %871 = vmatpush2.bf16.msra.mxu0 %v760
    %872 = vmatprep.mubr.bf16.mxu0 %v550
    %873 = vmatmul.mubr.bf16.gmra.mxu0 %v549
    %v874 = vpop.f32.mrf.mxu0
    %v875 = vadd.f32 0.0, %v874
    %v876 = vpop.f32.mrf.mxu0
    %v877 = vadd.f32 0.0, %v876
    %v878 = vpop.f32.mrf.mxu0
    %v879 = vpop.f32.mrf.mxu0
    %880 = vdwg.mxu0
    %881 = vmatprep.subr.bf16.mxu0 %v791
    %882 = vmatpush1.bf16.msra.mxu0 %v790
    %883 = vmatprep.subr.bf16.mxu0 %v789
    %884 = vmatpush1.bf16.msra.mxu0 %v788
    %885 = vmatprep.subr.bf16.mxu0 %v787
    %886 = vmatpush1.bf16.msra.mxu0 %v786
    %887 = vmatprep.subr.bf16.mxu0 %v785
    %888 = vmatpush1.bf16.msra.mxu0 %v784
    %889 = vmatprep.subr.bf16.mxu0 %v783
    %890 = vmatpush1.bf16.msra.mxu0 %v782
    %891 = vmatprep.subr.bf16.mxu0 %v781
    %892 = vmatpush1.bf16.msra.mxu0 %v780
    %893 = vmatprep.subr.bf16.mxu0 %v779
    %894 = vmatpush1.bf16.msra.mxu0 %v778
    %895 = vmatprep.subr.bf16.mxu0 %v777
    %896 = vmatpush1.bf16.msra.mxu0 %v776
    %897 = vmatprep.subr.bf16.mxu0 0
    %898 = vmatpush2.bf16.msra.mxu0 0
    %899 = vmatprep.subr.bf16.mxu0 0
    %900 = vmatpush2.bf16.msra.mxu0 0
    %901 = vmatprep.subr.bf16.mxu0 0
    %902 = vmatpush2.bf16.msra.mxu0 0
    %903 = vmatprep.subr.bf16.mxu0 0
    %904 = vmatpush2.bf16.msra.mxu0 0
    %905 = vmatprep.subr.bf16.mxu0 0
    %906 = vmatpush2.bf16.msra.mxu0 0
    %907 = vmatprep.subr.bf16.mxu0 0
    %908 = vmatpush2.bf16.msra.mxu0 0
    %909 = vmatprep.subr.bf16.mxu0 0
    %910 = vmatpush2.bf16.msra.mxu0 0
    %911 = vmatprep.subr.bf16.mxu0 0
    %912 = vmatpush2.bf16.msra.mxu0 0
    %913 = vmatprep.mubr.bf16.mxu0 0
    %914 = vmatmul.mubr.bf16.gmra.mxu0 %v551
    %v915 = vpop.f32.mrf.mxu0
    %v916 = vadd.f32 %v875, %v915
    %v917 = vpop.f32.mrf.mxu0
    %v918 = vadd.f32 %v877, %v917
    %v919 = vpop.f32.mrf.mxu0
    %v920 = vpop.f32.mrf.mxu0
    %921 = vdwg.mxu0
    %v922 = vrot.slane %v916, 4
    %v923 = vadd.f32 %v916, %v922
    %v924 = vrot.slane %v923, 2
    %v925 = vadd.f32 %v923, %v924
    %v926 = vrot.slane %v925, 1
    %v927 = vadd.f32 %v925, %v926
    %v928 = vrot.slane %v918, 4
    %v929 = vadd.f32 %v918, %v928
    %v930 = vrot.slane %v929, 2
    %v931 = vadd.f32 %v929, %v930
    %v932 = vrot.slane %v931, 1
    %v933 = vadd.f32 %v931, %v932
    %v934 = vmul.f32 %v916, %v916
    %v935 = vmul.f32 %v918, %v918
    %v936 = vrot.slane %v934, 4
    %v937 = vadd.f32 %v934, %v936
    %v938 = vrot.slane %v937, 2
    %v939 = vadd.f32 %v937, %v938
    %v940 = vrot.slane %v939, 1
    %v941 = vadd.f32 %v939, %v940
    %v942 = vrot.slane %v935, 4
    %v943 = vadd.f32 %v935, %v942
    %v944 = vrot.slane %v943, 2
    %v945 = vadd.f32 %v943, %v944
    %v946 = vrot.slane %v945, 1
    %v947 = vadd.f32 %v945, %v946
    %v948 = vmul.f32 %v927, 0.125
    %v949 = vmul.f32 %v933, 0.125
    %v950 = vmul.f32 %v941, 0.125
    %v951 = vmul.f32 %v947, 0.125
    %v952 = vmul.f32 %v948, %v948
    %v953 = vmul.f32 %v949, %v949
    %v954 = vsub.f32 %v950, %v952
    %v955 = vsub.f32 %v951, %v953
    %v956 = vmax.f32 %v954, 0.0
    %v957 = vmax.f32 %v955, 0.0
    %v958 = vadd.f32 %v956, 1e-05
    %v959 = vadd.f32 %v957, 1e-05
    %v960 = vrsqrt.pop %v958
    %v961 = vrsqrt.pop %v959
    %v962 = vmul.f32 %v86, %v960
    %v963 = vmul.f32 %v87, %v961
    %v964 = vmul.f32 %v962, %v948
    %v965 = vmul.f32 %v963, %v949
    %v968 = vrot.slane %v964, 7
    %v969 = vrot.slane %v965, 7
    %v972 = vsub.f32 %v86, %v968
    %v973 = vsub.f32 %v87, %v969
    %v974 = vlaneseq
    %v975 = vshrl.u32 %v974, 7
    %v976 = vsub.s32 4, %v975
    %v977 = vrot.slane %v962, %v976
    %v978 = vlaneseq
    %v979 = vshrl.u32 %v978, 7
    %v980 = vsub.s32 4, %v979
    %v981 = vrot.slane %v963, %v980
    %v982 = vmul.f32 %v916, %v977
    %v983 = vmul.f32 %v918, %v981
    %v984 = vlaneseq
    %v985 = vshrl.u32 %v984, 7
    %v986 = vsub.s32 5, %v985
    %v987 = vrot.slane %v972, %v986
    %v988 = vlaneseq
    %v989 = vshrl.u32 %v988, 7
    %v990 = vsub.s32 5, %v989
    %v991 = vrot.slane %v973, %v990
    %v992 = vadd.f32 %v982, %v987
    %v993 = vadd.f32 %v983, %v991
    %994 = vst [vmem:[#allocation11] sm:$0xff] %v992
    %vm995 = vcmask 752640
    %996 = vst.msk [vmem:[#allocation11 + $0x8] sm:$0xff] %vm995, %v993
    // Predicated region
    $region42: #{tpu_custom_call.1} parent=1 // pred_check
      _
    $region43: #{tpu_custom_call.1} parent=1 // pred_check_branch
      %998 = sbr.rel (0) target = $region45
    $region44: #{tpu_custom_call.1} parent=1 // pred_region
      %s1000 = ssub.s32 256, 256
      %1001 = vsyncadd [#allocation4], %s1000
      %s1003 = sshll.u32 [#allocation11], 4
      %s1004 = int_to_ptr.vmem [resolvable:$true] %s1003
      %1006 = dma.vmem_to_hbm [thread:$0]  %s1004, 256, %s5, [#allocation4]
    $region45: #{tpu_custom_call.1} parent=1 // pred_fallthru
      _
    // Predicated region
    $region46: #{tpu_custom_call.1} parent=1 // pred_check
      _
    $region47: #{tpu_custom_call.1} parent=1 // pred_check_branch
      %1008 = sbr.rel (0) target = $region49
    $region48: #{tpu_custom_call.1} parent=1 // pred_region
      %1009 = dma.done [#allocation4], 256
    $region49: #{tpu_custom_call.1} parent=1 // pred_fallthru
      _
    %1010 = vsyncpa [#allocation3], 1
    %1011 = vsyncpa [#allocation6], 1
    %1012 = vsyncpa [#allocation9], 1
    %1013 = vsyncpa [#allocation4], 1

</llo_original>
